<compile_context>
chip_gen: v7x
topology: tpu7x:2x2x1
jax: 0.10.0
libtpu: 0.0.40
codegen_flags: <defaults>
</compile_context>

<pallas_src>
import jax
import jax.numpy as jnp
from jax import lax
from jax.experimental import pallas as pl
from jax.experimental.pallas import tpu as pltpu


def sage_kernel(adj_ref, x_ref, w_ref, gamma_ref, beta_ref, o_ref):
    # adj_ref:   (Bt, N, N)    -- hop-1 already selected (K axis squeezed by BlockSpec)
    # x_ref:     (Bt, N, Din)
    # w_ref:     (2*Din, Dout)
    # gamma/beta:(1, Dout)
    # o_ref:     (Bt*N, Dout)  -- flat over the batch tile
    Bt, N, _ = adj_ref.shape
    Din = x_ref.shape[-1]
    Dout = w_ref.shape[-1]

    adj = adj_ref[...]                          # (Bt, N, N)
    x3 = x_ref[...]                             # (Bt, N, Din)
    x2 = x3.reshape(Bt * N, Din)                # sublane-aligned merge (N % 8 == 0 here)

    w_top = w_ref[:Din, :]                      # applied to the aggregated neighbourhood
    w_bot = w_ref[Din:, :]                      # applied to the node's own features

    if Din <= Dout:
        # aggregate first (N^2 * Din FLOPs), then one flattened projection matmul
        agg = jnp.einsum('bnm,bmd->bnd', adj, x3,
                         preferred_element_type=jnp.float32)          # (Bt, N, Din)
        part_a = jnp.dot(agg.reshape(Bt * N, Din), w_top,
                         preferred_element_type=jnp.float32)          # (Bt*N, Dout)
    else:
        # project first, then aggregate (N^2 * Dout FLOPs)
        xw = jnp.dot(x2, w_top, preferred_element_type=jnp.float32)   # (Bt*N, Dout)
        part_a = jnp.einsum('bnm,bmd->bnd', adj, xw.reshape(Bt, N, Dout),
                            preferred_element_type=jnp.float32
                            ).reshape(Bt * N, Dout)

    h = part_a + jnp.dot(x2, w_bot, preferred_element_type=jnp.float32)  # (Bt*N, Dout)

    # LayerNorm over the feature dim (biased variance, eps=1e-5 -> matches nn.LayerNorm)
    mean = jnp.mean(h, axis=-1, keepdims=True)
    var = jnp.mean((h - mean) ** 2, axis=-1, keepdims=True)
    hn = (h - mean) * lax.rsqrt(var + 1e-5)
    hn = hn * gamma_ref[...] + beta_ref[...]

    # act = relu ; dropout(p=0.0) is identity
    o_ref[...] = jnp.maximum(hn, 0.0).astype(o_ref.dtype)


def _pick_batch_tile(B, N, target_rows=256):
    """Largest divisor Bt of B with Bt*N <= target_rows, preferring >=2 grid blocks."""
    divisors = [d for d in range(1, B + 1) if B % d == 0]
    fits = [d for d in divisors if d * N <= target_rows] or [1]
    two_blocks = [d for d in fits if B // d >= 2]
    return max(two_blocks) if two_blocks else max(fits)


def graphsage_layer(x, adj_batch, weight, ln_gamma, ln_beta, *, target_rows=256):
    """x: (N, B, Din), adj_batch: (B, K, N, N), weight: (2*Din, Dout) -> (N, B, Dout)."""
    N, B, Din = x.shape
    Dout = weight.shape[1]
    Bt = _pick_batch_tile(B, N, target_rows)
    grid_b = B // Bt

    # Layout glue.  The hop-1 slice of adj_batch is NOT done here (index_map does it).
    xb = jnp.transpose(x, (1, 0, 2))          # (B, N, Din)
    gamma = ln_gamma.reshape(1, Dout)
    beta = ln_beta.reshape(1, Dout)

    out_flat = pl.pallas_call(
        sage_kernel,
        out_shape=jax.ShapeDtypeStruct((B * N, Dout), jnp.float32),
        grid_spec=pltpu.PrefetchScalarGridSpec(
            num_scalar_prefetch=0,
            grid=(grid_b,),
            in_specs=[
                # hop 1 picked straight out of adj_batch: Squeezed K axis, block idx 1
                pl.BlockSpec((Bt, None, N, N), lambda b: (b, 1, 0, 0)),
                pl.BlockSpec((Bt, N, Din), lambda b: (b, 0, 0)),
                pl.BlockSpec((2 * Din, Dout), lambda b: (0, 0)),
                pl.BlockSpec((1, Dout), lambda b: (0, 0)),
                pl.BlockSpec((1, Dout), lambda b: (0, 0)),
            ],
            out_specs=pl.BlockSpec((Bt * N, Dout), lambda b: (b, 0)),
        ),
        compiler_params=pltpu.CompilerParams(
            dimension_semantics=("parallel",)),
    )(adj_batch, xb, weight, gamma, beta)

    out = out_flat.reshape(B, N, Dout)        # free reshape (row-major contiguous)
    return jnp.transpose(out, (1, 0, 2))      # back to the PyTorch (N, B, Dout) layout


def reference_jax(x, adj_batch, weight, ln_gamma, ln_beta):
    xb = jnp.transpose(x, (1, 0, 2))
    adj = adj_batch[:, 1, :, :]
    h = jnp.concatenate([jnp.matmul(adj, xb), xb], axis=2) @ weight
    mean = jnp.mean(h, axis=-1, keepdims=True)
    var = jnp.mean((h - mean) ** 2, axis=-1, keepdims=True)
    h = (h - mean) / jnp.sqrt(var + 1e-5) * ln_gamma + ln_beta
    h = jnp.maximum(h, 0.0)
    return jnp.transpose(h, (1, 0, 2))


if __name__ == "__main__":
    key = jax.random.PRNGKey(0)
    N, B, Din, Dout, K = 8, 4, 16, 32, 3   # nodes, batch, input_dim, output_dim, hops

    k_x, k_adj, k_w = jax.random.split(key, 3)
    x = jax.random.normal(k_x, (N, B, Din), dtype=jnp.float32)
    adj_batch = jax.random.uniform(k_adj, (B, K, N, N), dtype=jnp.float32)

    # xavier_uniform_ on (2*Din, Dout): bound = sqrt(6 / (fan_in + fan_out))
    bound = (6.0 / (2 * Din + Dout)) ** 0.5
    weight = jax.random.uniform(k_w, (2 * Din, Dout), dtype=jnp.float32,
                                minval=-bound, maxval=bound)
    ln_gamma = jnp.ones((Dout,), dtype=jnp.float32)
    ln_beta = jnp.zeros((Dout,), dtype=jnp.float32)

    out = graphsage_layer(x, adj_batch, weight, ln_gamma, ln_beta)
    out = jax.block_until_ready(out)

    ref = reference_jax(x, adj_batch, weight, ln_gamma, ln_beta)
    assert out.shape == (N, B, Dout)
    assert jnp.allclose(out, ref, atol=1e-5, rtol=1e-5), "mismatch vs reference"
    print("KERNEL_OK")
</pallas_src>

<mosaic_0001>
module attributes {stable_mosaic.version = 11 : i64} {
  func.func @sage_kernel(%arg0: i32, %arg1: memref<2x1x8x8xf32, #tpu.memory_space<vmem>>, %arg2: memref<2x8x16xf32, #tpu.memory_space<vmem>>, %arg3: memref<32x32xf32, #tpu.memory_space<vmem>>, %arg4: memref<1x32xf32, #tpu.memory_space<vmem>>, %arg5: memref<1x32xf32, #tpu.memory_space<vmem>>, %arg6: memref<16x32xf32, #tpu.memory_space<vmem>>) attributes {dimension_semantics = [#tpu.dimension_semantics<parallel>], iteration_bounds = array<i64: 2>, scalar_prefetch = 0 : i64, scratch_operands = 0 : i64, tpu.core_type = #tpu.core_type<tc>, window_params = [{transform_indices = @transform_0, window_bounds = array<i64: 2, 1, 8, 8>}, {transform_indices = @transform_1, window_bounds = array<i64: 2, 8, 16>}, {pipeline_mode = #tpu.pipeline_mode<synchronous>, transform_indices = @transform_2, window_bounds = array<i64: 32, 32>}, {pipeline_mode = #tpu.pipeline_mode<synchronous>, transform_indices = @transform_3, window_bounds = array<i64: 1, 32>}, {pipeline_mode = #tpu.pipeline_mode<synchronous>, transform_indices = @transform_4, window_bounds = array<i64: 1, 32>}, {transform_indices = @transform_5, window_bounds = array<i64: 16, 32>}]} {
    %c0 = arith.constant 0 : index
    %c0_0 = arith.constant 0 : index
    %c0_1 = arith.constant 0 : index
    %c0_2 = arith.constant 0 : index
    %0 = vector.load %arg1[%c0, %c0_0, %c0_1, %c0_2] : memref<2x1x8x8xf32, #tpu.memory_space<vmem>>, vector<2x1x8x8xf32>
    %1 = vector.shape_cast %0 : vector<2x1x8x8xf32> to vector<2x8x8xf32>
    %c0_3 = arith.constant 0 : index
    %c0_4 = arith.constant 0 : index
    %c0_5 = arith.constant 0 : index
    %2 = vector.load %arg2[%c0_3, %c0_4, %c0_5] : memref<2x8x16xf32, #tpu.memory_space<vmem>>, vector<2x8x16xf32>
    %3 = vector.shape_cast %2 : vector<2x8x16xf32> to vector<16x16xf32>
    %c0_6 = arith.constant 0 : index
    %c0_7 = arith.constant 0 : index
    %4 = vector.load %arg3[%c0_6, %c0_7] : memref<32x32xf32, #tpu.memory_space<vmem>>, vector<16x32xf32>
    %c16 = arith.constant 16 : index
    %c0_8 = arith.constant 0 : index
    %5 = vector.load %arg3[%c16, %c0_8] : memref<32x32xf32, #tpu.memory_space<vmem>>, vector<16x32xf32>
    "tpu.trace_start"() <{level = 10 : i32, message = "bnm,bmd->bnd"}> : () -> ()
    %cst = arith.constant dense<0.000000e+00> : vector<2x8x16xf32>
    %6 = tpu.matmul %1, %2, %cst {dimension_numbers = #tpu.dot_dimension_numbers<[2], [1], [1], [2], [0, 0, 0, 1, 1, 2], [0], [0]>} : vector<2x8x8xf32>, vector<2x8x16xf32>, vector<2x8x16xf32> -> vector<2x8x16xf32>
    "tpu.trace_stop"() : () -> ()
    %7 = vector.shape_cast %6 : vector<2x8x16xf32> to vector<16x16xf32>
    %cst_9 = arith.constant dense<0.000000e+00> : vector<16x32xf32>
    %8 = tpu.matmul %7, %4, %cst_9 {dimension_numbers = #tpu.dot_dimension_numbers<[1], [0], [0], [1], [0, 0, 1, 1], [], []>} : vector<16x16xf32>, vector<16x32xf32>, vector<16x32xf32> -> vector<16x32xf32>
    %cst_10 = arith.constant dense<0.000000e+00> : vector<16x32xf32>
    %9 = tpu.matmul %3, %5, %cst_10 {dimension_numbers = #tpu.dot_dimension_numbers<[1], [0], [0], [1], [0, 0, 1, 1], [], []>} : vector<16x16xf32>, vector<16x32xf32>, vector<16x32xf32> -> vector<16x32xf32>
    %10 = arith.addf %8, %9 : vector<16x32xf32>
    %cst_11 = arith.constant dense<0.000000e+00> : vector<16xf32>
    %11 = vector.multi_reduction <add>, %10, %cst_11 [1] : vector<16x32xf32> to vector<16xf32>
    %12 = vector.shape_cast %11 : vector<16xf32> to vector<16x1xf32>
    %cst_12 = arith.constant 3.200000e+01 : f32
    %13 = vector.broadcast %cst_12 : f32 to vector<16x1xf32>
    %14 = arith.divf %12, %13 : vector<16x1xf32>
    %15 = vector.broadcast %14 : vector<16x1xf32> to vector<16x32xf32>
    %16 = arith.subf %10, %15 : vector<16x32xf32>
    %17 = arith.mulf %16, %16 : vector<16x32xf32>
    %cst_13 = arith.constant dense<0.000000e+00> : vector<16xf32>
    %18 = vector.multi_reduction <add>, %17, %cst_13 [1] : vector<16x32xf32> to vector<16xf32>
    %19 = vector.shape_cast %18 : vector<16xf32> to vector<16x1xf32>
    %cst_14 = arith.constant 3.200000e+01 : f32
    %20 = vector.broadcast %cst_14 : f32 to vector<16x1xf32>
    %21 = arith.divf %19, %20 : vector<16x1xf32>
    %22 = vector.broadcast %14 : vector<16x1xf32> to vector<16x32xf32>
    %23 = arith.subf %10, %22 : vector<16x32xf32>
    %cst_15 = arith.constant 9.99999974E-6 : f32
    %24 = vector.broadcast %cst_15 : f32 to vector<16x1xf32>
    %25 = arith.addf %21, %24 : vector<16x1xf32>
    %26 = math.rsqrt %25 : vector<16x1xf32>
    %27 = vector.broadcast %26 : vector<16x1xf32> to vector<16x32xf32>
    %28 = arith.mulf %23, %27 : vector<16x32xf32>
    %c0_16 = arith.constant 0 : index
    %c0_17 = arith.constant 0 : index
    %29 = vector.load %arg4[%c0_16, %c0_17] : memref<1x32xf32, #tpu.memory_space<vmem>>, vector<1x32xf32>
    %30 = vector.broadcast %29 : vector<1x32xf32> to vector<16x32xf32>
    %31 = arith.mulf %28, %30 : vector<16x32xf32>
    %c0_18 = arith.constant 0 : index
    %c0_19 = arith.constant 0 : index
    %32 = vector.load %arg5[%c0_18, %c0_19] : memref<1x32xf32, #tpu.memory_space<vmem>>, vector<1x32xf32>
    %33 = vector.broadcast %32 : vector<1x32xf32> to vector<16x32xf32>
    %34 = arith.addf %31, %33 : vector<16x32xf32>
    %cst_20 = arith.constant 0.000000e+00 : f32
    %35 = vector.broadcast %cst_20 : f32 to vector<16x32xf32>
    %36 = arith.maximumf %34, %35 : vector<16x32xf32>
    %c0_21 = arith.constant 0 : index
    %c0_22 = arith.constant 0 : index
    %37 = vector.load %arg6[%c0_21, %c0_22] : memref<16x32xf32, #tpu.memory_space<vmem>>, vector<16x32xf32>
    tpu.vector_store %arg6[%c0_21, %c0_22], %36 {strides = array<i32>} : memref<16x32xf32, #tpu.memory_space<vmem>>, vector<16x32xf32>,
    return
  }
  func.func @transform_0(%arg0: i32) -> (i32, i32, i32, i32) {
    %c1_i32 = arith.constant 1 : i32
    %c0_i32 = arith.constant 0 : i32
    %c0_i32_0 = arith.constant 0 : i32
    %c0_i32_1 = arith.constant 0 : i32
    return %arg0, %c1_i32, %c0_i32, %c0_i32_0 : i32, i32, i32, i32
  }
  func.func @transform_1(%arg0: i32) -> (i32, i32, i32) {
    %c0_i32 = arith.constant 0 : i32
    %c0_i32_0 = arith.constant 0 : i32
    %c0_i32_1 = arith.constant 0 : i32
    return %arg0, %c0_i32, %c0_i32_0 : i32, i32, i32
  }
  func.func @transform_2(%arg0: i32) -> (i32, i32) {
    %c0_i32 = arith.constant 0 : i32
    %c0_i32_0 = arith.constant 0 : i32
    %c0_i32_1 = arith.constant 0 : i32
    return %c0_i32, %c0_i32_0 : i32, i32
  }
  func.func @transform_3(%arg0: i32) -> (i32, i32) {
    %c0_i32 = arith.constant 0 : i32
    %c0_i32_0 = arith.constant 0 : i32
    %c0_i32_1 = arith.constant 0 : i32
    return %c0_i32, %c0_i32_0 : i32, i32
  }
  func.func @transform_4(%arg0: i32) -> (i32, i32) {
    %c0_i32 = arith.constant 0 : i32
    %c0_i32_0 = arith.constant 0 : i32
    %c0_i32_1 = arith.constant 0 : i32
    return %c0_i32, %c0_i32_0 : i32, i32
  }
  func.func @transform_5(%arg0: i32) -> (i32, i32) {
    %c0_i32 = arith.constant 0 : i32
    %c0_i32_0 = arith.constant 0 : i32
    return %arg0, %c0_i32 : i32, i32
  }
}

</mosaic_0001>

<llo_original>
// kernel: tpu_custom_call.1
$region0: #{tpu_custom_call.1}
  #allocation0 [shape = 'u32[]', space=smem, size = 0x4, offset = 0x4, fixed_abs, tag = 'smem constant byte address 0x4 - core index']
  #allocation1 [shape = 'u32[144,128]{1,0:T(1,128)}', space=vmem, size = 0x12000, scoped, tag = 'internal scratch']
  %s0 = inlined_call_operand.hbm [shape: f32[4,3,8,8], index: 0, kind: input, shape index: {}]
  %s1 = inlined_call_operand.hbm [shape: f32[4,8,16], index: 1, kind: input, shape index: {}]
  %s2 = inlined_call_operand.hbm [shape: f32[32,32], index: 2, kind: input, shape index: {}]
  %s3 = inlined_call_operand.vmem [shape: f32[1,32], index: 3, kind: input, shape index: {}]
  %s4 = inlined_call_operand.vmem [shape: f32[1,32], index: 4, kind: input, shape index: {}]
  %s5 = inlined_call_operand.hbm [shape: f32[32,32], index: 5, kind: output, shape index: {}]
  %s6 = sld [smem:[#allocation0]]
  $region65: #{tpu_custom_call.1} parent=0
    _
  %s8 = ssub.s32 1, %s6
  %s9 = scalar_select 0, %s8, %s6
  $region1: #{tpu_custom_call.1} parent=0
    #allocation2 [shape = 'u8[16384]{0}', space=vmem, size = 0x4000, scoped, tag = 'input window, operand 0']
    #allocation3 [shape = 's32[2]{0}', space=sflag, size = 0x8, scoped, tag = 'scoped memory for tpu_custom_call.1']
    #allocation4 [shape = 's32[2]{0}', space=sflag, size = 0x8, scoped, tag = 'scoped memory for tpu_custom_call.1']
    #allocation5 [shape = 'u8[16384]{0}', space=vmem, size = 0x4000, scoped, tag = 'input window, operand 1']
    #allocation6 [shape = 's32[2]{0}', space=sflag, size = 0x8, scoped, tag = 'scoped memory for tpu_custom_call.1']
    #allocation7 [shape = 'u8[16384]{0}', space=vmem, size = 0x4000, scoped, tag = 'input window, operand 2, single buffered']
    #allocation8 [shape = 'u8[16384]{0}', space=vmem, size = 0x4000, scoped, tag = 'output window, operand 0']
    %10 = vsyncpa [#allocation3], 0
    %s11 = scalar_lea.sflag [#allocation3], 1
    %12 = vsyncpa %s11, 0
    %13 = vsyncpa [#allocation6], 0
    %s14 = scalar_lea.sflag [#allocation6], 1
    %15 = vsyncpa %s14, 0
    %16 = vsyncpa [#allocation4], 0
    %s17 = scalar_lea.sflag [#allocation4], 1
    %18 = vsyncpa %s17, 0
    loop: start=0, step=1, limit=4
    $region2: #{tpu_custom_call.1} parent=1 // loop_pre_header
      _
    $region3: #{tpu_custom_call.1} parent=1 // loop_header
      %s20 = sphi 0, %s24
      %p21 = scmp.ge.s32.totalorder %s20, 4
      %s30 = sphi 0, %s32
      %s33 = sphi 0, %s30
      %s34 = sphi 0, %s33
      %s50 = sphi 0, %s34
      %s56 = sphi 0, %s58
      %s59 = sphi 0, %s56
      %s60 = sphi 0, %s59
      %s76 = sphi 0, %s60
      %s80 = sphi 0, %s80
      %s82 = sphi 0, %s80
      %s83 = sphi 0, %s82
      %s97 = sphi 0, %s83
      %s101 = sphi 0, %s101
      %s103 = sphi 0, %s101
      %s104 = sphi 0, %s103
      %s118 = sphi 0, %s104
      %s122 = sphi 0, %s122
      %s124 = sphi 0, %s122
      %s125 = sphi 0, %s124
      %s139 = sphi 0, %s125
      %s145 = sphi 0, %s147
      %s148 = sphi 0, %s145
      %s149 = sphi 0, %s148
      %s165 = sphi 0, %s149
    $region4: #{tpu_custom_call.1} parent=1 // loop_header_branch
      %23 = sbr.rel (%p21) target = $region8
    $region5: #{tpu_custom_call.1} parent=1 // loop_body
      %s25 = ssub.s32 %s20, 1
      %s26 = ssub.s32 %s20, 2
      %s27 = sadd.s32 %s20, 1
      %s28 = ssub.s32 %s20, %s27
      %p29 = scmp.eq.s32.totalorder %s28, 0
      %s31 = sadd.s32 %s30, 1
      %s32 = scalar_select %p29, %s30, %s31
      %p35 = pneg %p29
      %p36 = scmp.eq.s32.totalorder %s20, 1
      %p37 = por %p35, %p36
      %p38 = scmp.ne.s32.totalorder %s30, %s33
      %p39 = scmp.eq.s32.totalorder %s20, 0
      %p40 = por %p38, %p39
      %p41 = scmp.ne.s32.totalorder %s30, %s33
      %p42 = scmp.eq.s32.totalorder %s25, 1
      %p43 = por %p41, %p42
      %p44 = scmp.ne.s32.totalorder %s33, %s34
      %p45 = scmp.eq.s32.totalorder %s25, 0
      %p46 = por %p44, %p45
      %p47 = scmp.ne.s32.totalorder %s33, %s34
      %p48 = scmp.eq.s32.totalorder %s26, 1
      %p49 = por %p47, %p48
      %p51 = scmp.ne.s32.totalorder %s34, %s50
      %p52 = scmp.eq.s32.totalorder %s26, 0
      %p53 = por %p51, %p52
      %s54 = ssub.s32 %s20, %s27
      %p55 = scmp.eq.s32.totalorder %s54, 0
      %s57 = sadd.s32 %s56, 1
      %s58 = scalar_select %p55, %s56, %s57
      %p61 = pneg %p55
      %p62 = scmp.eq.s32.totalorder %s20, 1
      %p63 = por %p61, %p62
      %p64 = scmp.ne.s32.totalorder %s56, %s59
      %p65 = scmp.eq.s32.totalorder %s20, 0
      %p66 = por %p64, %p65
      %p67 = scmp.ne.s32.totalorder %s56, %s59
      %p68 = scmp.eq.s32.totalorder %s25, 1
      %p69 = por %p67, %p68
      %p70 = scmp.ne.s32.totalorder %s59, %s60
      %p71 = scmp.eq.s32.totalorder %s25, 0
      %p72 = por %p70, %p71
      %p73 = scmp.ne.s32.totalorder %s59, %s60
      %p74 = scmp.eq.s32.totalorder %s26, 1
      %p75 = por %p73, %p74
      %p77 = scmp.ne.s32.totalorder %s60, %s76
      %p78 = scmp.eq.s32.totalorder %s26, 0
      %p79 = por %p77, %p78
      %s81 = sadd.s32 %s80, 1
      %p84 = scmp.eq.s32.totalorder %s20, 1
      %p85 = scmp.ne.s32.totalorder %s80, %s82
      %p86 = scmp.eq.s32.totalorder %s20, 0
      %p87 = por %p85, %p86
      %p88 = scmp.ne.s32.totalorder %s80, %s82
      %p89 = scmp.eq.s32.totalorder %s25, 1
      %p90 = por %p88, %p89
      %p91 = scmp.ne.s32.totalorder %s82, %s83
      %p92 = scmp.eq.s32.totalorder %s25, 0
      %p93 = por %p91, %p92
      %p94 = scmp.ne.s32.totalorder %s82, %s83
      %p95 = scmp.eq.s32.totalorder %s26, 1
      %p96 = por %p94, %p95
      %p98 = scmp.ne.s32.totalorder %s83, %s97
      %p99 = scmp.eq.s32.totalorder %s26, 0
      %p100 = por %p98, %p99
      %s102 = sadd.s32 %s101, 1
      %p105 = scmp.eq.s32.totalorder %s20, 1
      %p106 = scmp.ne.s32.totalorder %s101, %s103
      %p107 = scmp.eq.s32.totalorder %s20, 0
      %p108 = por %p106, %p107
      %p109 = scmp.ne.s32.totalorder %s101, %s103
      %p110 = scmp.eq.s32.totalorder %s25, 1
      %p111 = por %p109, %p110
      %p112 = scmp.ne.s32.totalorder %s103, %s104
      %p113 = scmp.eq.s32.totalorder %s25, 0
      %p114 = por %p112, %p113
      %p115 = scmp.ne.s32.totalorder %s103, %s104
      %p116 = scmp.eq.s32.totalorder %s26, 1
      %p117 = por %p115, %p116
      %p119 = scmp.ne.s32.totalorder %s104, %s118
      %p120 = scmp.eq.s32.totalorder %s26, 0
      %p121 = por %p119, %p120
      %s123 = sadd.s32 %s122, 1
      %p126 = scmp.eq.s32.totalorder %s20, 1
      %p127 = scmp.ne.s32.totalorder %s122, %s124
      %p128 = scmp.eq.s32.totalorder %s20, 0
      %p129 = por %p127, %p128
      %p130 = scmp.ne.s32.totalorder %s122, %s124
      %p131 = scmp.eq.s32.totalorder %s25, 1
      %p132 = por %p130, %p131
      %p133 = scmp.ne.s32.totalorder %s124, %s125
      %p134 = scmp.eq.s32.totalorder %s25, 0
      %p135 = por %p133, %p134
      %p136 = scmp.ne.s32.totalorder %s124, %s125
      %p137 = scmp.eq.s32.totalorder %s26, 1
      %p138 = por %p136, %p137
      %p140 = scmp.ne.s32.totalorder %s125, %s139
      %p141 = scmp.eq.s32.totalorder %s26, 0
      %p142 = por %p140, %p141
      %s143 = ssub.s32 %s20, %s27
      %p144 = scmp.eq.s32.totalorder %s143, 0
      %s146 = sadd.s32 %s145, 1
      %s147 = scalar_select %p144, %s145, %s146
      %p150 = pneg %p144
      %p151 = scmp.eq.s32.totalorder %s20, 1
      %p152 = por %p150, %p151
      %p153 = scmp.ne.s32.totalorder %s145, %s148
      %p154 = scmp.eq.s32.totalorder %s20, 0
      %p155 = por %p153, %p154
      %p156 = scmp.ne.s32.totalorder %s145, %s148
      %p157 = scmp.eq.s32.totalorder %s25, 1
      %p158 = por %p156, %p157
      %p159 = scmp.ne.s32.totalorder %s148, %s149
      %p160 = scmp.eq.s32.totalorder %s25, 0
      %p161 = por %p159, %p160
      %p162 = scmp.ne.s32.totalorder %s148, %s149
      %p163 = scmp.eq.s32.totalorder %s26, 1
      %p164 = por %p162, %p163
      %p166 = scmp.ne.s32.totalorder %s149, %s165
      %p167 = scmp.eq.s32.totalorder %s26, 0
      %p168 = por %p166, %p167
      %p169 = scmp.le.s32.totalorder 1, %s20
      %p170 = scmp.lt.s32.totalorder %s20, 3
      %p171 = pnand %p169, %p170
      %p172 = pneg %p171
      // Predicated region
      $region9: #{tpu_custom_call.1} parent=5 // pred_check
        _
      $region10: #{tpu_custom_call.1} parent=5 // pred_check_branch
        %174 = sbr.rel (%p171) target = $region12
      $region11: #{tpu_custom_call.1} parent=5 // pred_region
        %s175 = ssub.s32 %s20, 1
        // Predicated region
        $region13: #{tpu_custom_call.1} parent=11 // pred_check
          %p176 = pneg %p93
        $region14: #{tpu_custom_call.1} parent=11 // pred_check_branch
          %178 = sbr.rel (%p176) target = $region16
        $region15: #{tpu_custom_call.1} parent=11 // pred_region
          %s180 = ssub.s32 512, 512
          %181 = vsyncadd [#allocation6], %s180
          %s182 = sshll.u32 [#allocation7], 4
          %s183 = int_to_ptr.vmem [resolvable:$true] %s182
          %188 = dma.hbm_to_vmem [thread:$0]  %s2, 512, %s183, [#allocation6], 128, 128, 8
        $region16: #{tpu_custom_call.1} parent=11 // pred_fallthru
          _
        // Predicated region
        $region17: #{tpu_custom_call.1} parent=11 // pred_check
          %p189 = pneg %p114
        $region18: #{tpu_custom_call.1} parent=11 // pred_check_branch
          %191 = sbr.rel (%p189) target = $region20
        $region19: #{tpu_custom_call.1} parent=11 // pred_region
          _
        $region20: #{tpu_custom_call.1} parent=11 // pred_fallthru
          _
        // Predicated region
        $region21: #{tpu_custom_call.1} parent=11 // pred_check
          %p192 = pneg %p135
        $region22: #{tpu_custom_call.1} parent=11 // pred_check_branch
          %194 = sbr.rel (%p192) target = $region24
        $region23: #{tpu_custom_call.1} parent=11 // pred_region
          _
        $region24: #{tpu_custom_call.1} parent=11 // pred_fallthru
          _
      $region12: #{tpu_custom_call.1} parent=5 // pred_fallthru
        _
      %p195 = scmp.lt.s32.totalorder %s20, 2
      // Predicated region
      $region25: #{tpu_custom_call.1} parent=5 // pred_check
        %p196 = pneg %p195
      $region26: #{tpu_custom_call.1} parent=5 // pred_check_branch
        %198 = sbr.rel (%p196) target = $region28
      $region27: #{tpu_custom_call.1} parent=5 // pred_region
        // Predicated region
        $region29: #{tpu_custom_call.1} parent=27 // pred_check
          %p199 = pneg %p40
        $region30: #{tpu_custom_call.1} parent=27 // pred_check_branch
          %201 = sbr.rel (%p199) target = $region32
        $region31: #{tpu_custom_call.1} parent=27 // pred_region
          %s202 = sand.u32 %s30, 1
          %s203 = scalar_lea.sflag [#allocation3], %s202
          %s204 = sand.u32 %s30, 1
          %s205 = smul.addr %s204, 16
          %s206 = scalar_lea.vmem [#allocation2], %s205
          %s207 = smul.u32 2, %s20
          %s209 = ssub.s32 256, 256
          %210 = vsyncadd %s203, %s209
          %s211 = smul.addr %s207, 3
          %s212 = sadd.s32 1, %s211
          %s213 = smul.addr %s212, 128
          %s214 = scalar_lea.hbm %s0, %s213
          %s215 = sshll.u32 %s206, 4
          %s216 = int_to_ptr.vmem [resolvable:$true] %s215
          %221 = dma.hbm_to_vmem [thread:$0]  %s214, 256, %s216, %s203, 384, 128, 8
        $region32: #{tpu_custom_call.1} parent=27 // pred_fallthru
          _
        // Predicated region
        $region33: #{tpu_custom_call.1} parent=27 // pred_check
          %p222 = pneg %p66
        $region34: #{tpu_custom_call.1} parent=27 // pred_check_branch
          %224 = sbr.rel (%p222) target = $region36
        $region35: #{tpu_custom_call.1} parent=27 // pred_region
          %s225 = sand.u32 %s20, 1
          %s226 = scalar_lea.sflag [#allocation6], %s225
          %s227 = sand.u32 %s56, 1
          %s228 = smul.addr %s227, 16
          %s229 = scalar_lea.vmem [#allocation5], %s228
          %s230 = smul.u32 2, %s20
          %s232 = ssub.s32 256, 256
          %233 = vsyncadd %s226, %s232
          %s234 = smul.addr %s230, 128
          %s235 = scalar_lea.hbm %s1, %s234
          %s236 = sshll.u32 %s229, 4
          %s237 = int_to_ptr.vmem [resolvable:$true] %s236
          %242 = dma.hbm_to_vmem [thread:$0]  %s235, 256, %s237, %s226, 128, 128, 8
        $region36: #{tpu_custom_call.1} parent=27 // pred_fallthru
          _
      $region28: #{tpu_custom_call.1} parent=5 // pred_fallthru
        _
      %p243 = scmp.le.s32.totalorder 1, %s20
      %p244 = scmp.lt.s32.totalorder %s20, 3
      %p245 = pnand %p243, %p244
      %p246 = pneg %p245
      // Predicated region
      $region37: #{tpu_custom_call.1} parent=5 // pred_check
        _
      $region38: #{tpu_custom_call.1} parent=5 // pred_check_branch
        %248 = sbr.rel (%p245) target = $region40
      $region39: #{tpu_custom_call.1} parent=5 // pred_region
        %s249 = ssub.s32 %s20, 1
        %s250 = sand.u32 %s33, 1
        %s251 = scalar_lea.sflag [#allocation3], %s250
        %s252 = sand.u32 %s33, 1
        %s253 = smul.addr %s252, 16
        %s254 = scalar_lea.vmem [#allocation2], %s253
        // Predicated region
        $region41: #{tpu_custom_call.1} parent=39 // pred_check
          %p255 = pneg %p46
        $region42: #{tpu_custom_call.1} parent=39 // pred_check_branch
          %257 = sbr.rel (%p255) target = $region44
        $region43: #{tpu_custom_call.1} parent=39 // pred_region
          %258 = dma.done %s251, 256
        $region44: #{tpu_custom_call.1} parent=39 // pred_fallthru
          _
        %s259 = sand.u32 %s25, 1
        %s260 = scalar_lea.sflag [#allocation6], %s259
        %s261 = sand.u32 %s59, 1
        %s262 = smul.addr %s261, 16
        %s263 = scalar_lea.vmem [#allocation5], %s262
        // Predicated region
        $region45: #{tpu_custom_call.1} parent=39 // pred_check
          %p264 = pneg %p72
        $region46: #{tpu_custom_call.1} parent=39 // pred_check_branch
          %266 = sbr.rel (%p264) target = $region48
        $region47: #{tpu_custom_call.1} parent=39 // pred_region
          %267 = dma.done %s260, 256
        $region48: #{tpu_custom_call.1} parent=39 // pred_fallthru
          _
        // Predicated region
        $region49: #{tpu_custom_call.1} parent=39 // pred_check
          %p268 = pneg %p93
        $region50: #{tpu_custom_call.1} parent=39 // pred_check_branch
          %270 = sbr.rel (%p268) target = $region52
        $region51: #{tpu_custom_call.1} parent=39 // pred_region
          %271 = dma.done [#allocation6], 512
        $region52: #{tpu_custom_call.1} parent=39 // pred_fallthru
          _
        %s272 = sand.u32 %s33, 1
        %s273 = scalar_lea.sflag [#allocation3], %s272
        %s274 = sand.u32 %s33, 1
        %s275 = smul.addr %s274, 16
        %s276 = scalar_lea.vmem [#allocation2], %s275
        %p277 = pneg %p46
        %p278 = pneg %p43
        %s279 = sand.u32 %s25, 1
        %s280 = scalar_lea.sflag [#allocation6], %s279
        %s281 = sand.u32 %s59, 1
        %s282 = smul.addr %s281, 16
        %s283 = scalar_lea.vmem [#allocation5], %s282
        %p284 = pneg %p72
        %p285 = pneg %p69
        %p286 = pneg %p93
        %p287 = pneg %p90
        %p288 = pneg %p114
        %p289 = pneg %p111
        %p290 = pneg %p135
        %p291 = pneg %p132
        %p292 = pneg %p161
        %p293 = pneg %p158
        %s294 = sand.u32 %s148, 1
        %s295 = scalar_lea.sflag [#allocation4], %s294
        %s296 = sand.u32 %s148, 1
        %s297 = smul.addr %s296, 16
        %s298 = scalar_lea.vmem [#allocation8], %s297
        %s299 = smul.u32 2, %s25
        %s300 = smul.u32 2, %s25
        %s301 = smul.u32 2, %s25
        %v302 = vld [vmem:[%s254] sm:$0xff]
        %v303 = vld [vmem:[%s254 + $0x8] sm:$0xff]
        %v304 = vld [vmem:[%s263] sm:$0xff]
        %v305 = vld [vmem:[%s263 + $0x8] sm:$0xff]
        %v306 = vld [vmem:[#allocation7] sm:$0xff]
        %v307 = vld [vmem:[#allocation7 + $0x8] sm:$0xff]
        %v308 = vld [vmem:[#allocation7 + $0x10] sm:$0xff]
        %v309 = vld [vmem:[#allocation7 + $0x18] sm:$0xff]
        %vm310 = vcmask 64512
        %v312 = vsel %vm310, %v302, 0
        %314 = vmatprep.subr.mxu0 0.0
        %315 = vmatpush1.msra.mxu0 %v304
        %316 = vmatprep.subr.mxu0 0.0
        %317 = vmatpush1.msra.mxu0 0.0
        %318 = vmatprep.subr.mxu0 0.0
        %319 = vmatpush1.msra.mxu0 0.0
        %320 = vmatprep.subr.mxu0 0.0
        %321 = vmatpush1.msra.mxu0 0.0
        %322 = vmatprep.subr.mxu0 0.0
        %323 = vmatpush1.msra.mxu0 0.0
        %324 = vmatprep.subr.mxu0 0.0
        %325 = vmatpush1.msra.mxu0 0.0
        %326 = vmatprep.subr.mxu0 0.0
        %327 = vmatpush1.msra.mxu0 0.0
        %328 = vmatprep.subr.mxu0 0.0
        %329 = vmatpush1.msra.mxu0 0.0
        %330 = vmatprep.subr.mxu0 0.0
        %331 = vmatpush1.msra.mxu0 0.0
        %332 = vmatprep.subr.mxu0 0.0
        %333 = vmatpush1.msra.mxu0 0.0
        %334 = vmatprep.subr.mxu0 0.0
        %335 = vmatpush1.msra.mxu0 0.0
        %336 = vmatprep.subr.mxu0 0.0
        %337 = vmatpush1.msra.mxu0 0.0
        %338 = vmatprep.subr.mxu0 0.0
        %339 = vmatpush1.msra.mxu0 0.0
        %340 = vmatprep.subr.mxu0 0.0
        %341 = vmatpush1.msra.mxu0 0.0
        %342 = vmatprep.subr.mxu0 0.0
        %343 = vmatpush1.msra.mxu0 0.0
        %344 = vmatprep.subr.mxu0 0.0
        %345 = vmatpush1.msra.mxu0 0.0
        %346 = vmatprep.subr.mxu0 0.0
        %347 = vmatpush1.msra.mxu0 0.0
        %348 = vmatprep.subr.mxu0 0.0
        %349 = vmatpush1.msra.mxu0 0.0
        %350 = vmatprep.subr.mxu0 0.0
        %351 = vmatpush1.msra.mxu0 0.0
        %352 = vmatprep.subr.mxu0 0.0
        %353 = vmatpush1.msra.mxu0 0.0
        %354 = vmatprep.subr.mxu0 0.0
        %355 = vmatpush1.msra.mxu0 0.0
        %356 = vmatprep.subr.mxu0 0.0
        %357 = vmatpush1.msra.mxu0 0.0
        %358 = vmatprep.subr.mxu0 0.0
        %359 = vmatpush1.msra.mxu0 0.0
        %360 = vmatprep.subr.mxu0 0.0
        %361 = vmatpush1.msra.mxu0 0.0
        %362 = vmatprep.subr.mxu0 0.0
        %363 = vmatpush1.msra.mxu0 0.0
        %364 = vmatprep.subr.mxu0 0.0
        %365 = vmatpush1.msra.mxu0 0.0
        %366 = vmatprep.subr.mxu0 0.0
        %367 = vmatpush1.msra.mxu0 0.0
        %368 = vmatprep.subr.mxu0 0.0
        %369 = vmatpush1.msra.mxu0 0.0
        %370 = vmatprep.subr.mxu0 0.0
        %371 = vmatpush1.msra.mxu0 0.0
        %372 = vmatprep.subr.mxu0 0.0
        %373 = vmatpush1.msra.mxu0 0.0
        %374 = vmatprep.subr.mxu0 0.0
        %375 = vmatpush1.msra.mxu0 0.0
        %376 = vmatprep.subr.mxu0 0.0
        %377 = vmatpush1.msra.mxu0 0.0
        %378 = vmatprep.mubr.f32.mxu0 0.0
        %379 = vmatmul.mubr.f32.gmra.mrb[0].mxu0 %v312
        %v380 = vpop.f32.mrb[0].mxu0
        %v381 = vadd.f32 0.0, %v380
        %v382 = vpop.f32.mrb[0].mxu0
        %383 = vdwg.mxu0
        %v385 = vsel %vm310, %v303, 0
        %387 = vmatprep.subr.mxu0 0.0
        %388 = vmatpush1.msra.mxu0 %v305
        %389 = vmatprep.subr.mxu0 0.0
        %390 = vmatpush1.msra.mxu0 0.0
        %391 = vmatprep.subr.mxu0 0.0
        %392 = vmatpush1.msra.mxu0 0.0
        %393 = vmatprep.subr.mxu0 0.0
        %394 = vmatpush1.msra.mxu0 0.0
        %395 = vmatprep.subr.mxu0 0.0
        %396 = vmatpush1.msra.mxu0 0.0
        %397 = vmatprep.subr.mxu0 0.0
        %398 = vmatpush1.msra.mxu0 0.0
        %399 = vmatprep.subr.mxu0 0.0
        %400 = vmatpush1.msra.mxu0 0.0
        %401 = vmatprep.subr.mxu0 0.0
        %402 = vmatpush1.msra.mxu0 0.0
        %403 = vmatprep.subr.mxu0 0.0
        %404 = vmatpush1.msra.mxu0 0.0
        %405 = vmatprep.subr.mxu0 0.0
        %406 = vmatpush1.msra.mxu0 0.0
        %407 = vmatprep.subr.mxu0 0.0
        %408 = vmatpush1.msra.mxu0 0.0
        %409 = vmatprep.subr.mxu0 0.0
        %410 = vmatpush1.msra.mxu0 0.0
        %411 = vmatprep.subr.mxu0 0.0
        %412 = vmatpush1.msra.mxu0 0.0
        %413 = vmatprep.subr.mxu0 0.0
        %414 = vmatpush1.msra.mxu0 0.0
        %415 = vmatprep.subr.mxu0 0.0
        %416 = vmatpush1.msra.mxu0 0.0
        %417 = vmatprep.subr.mxu0 0.0
        %418 = vmatpush1.msra.mxu0 0.0
        %419 = vmatprep.subr.mxu0 0.0
        %420 = vmatpush1.msra.mxu0 0.0
        %421 = vmatprep.subr.mxu0 0.0
        %422 = vmatpush1.msra.mxu0 0.0
        %423 = vmatprep.subr.mxu0 0.0
        %424 = vmatpush1.msra.mxu0 0.0
        %425 = vmatprep.subr.mxu0 0.0
        %426 = vmatpush1.msra.mxu0 0.0
        %427 = vmatprep.subr.mxu0 0.0
        %428 = vmatpush1.msra.mxu0 0.0
        %429 = vmatprep.subr.mxu0 0.0
        %430 = vmatpush1.msra.mxu0 0.0
        %431 = vmatprep.subr.mxu0 0.0
        %432 = vmatpush1.msra.mxu0 0.0
        %433 = vmatprep.subr.mxu0 0.0
        %434 = vmatpush1.msra.mxu0 0.0
        %435 = vmatprep.subr.mxu0 0.0
        %436 = vmatpush1.msra.mxu0 0.0
        %437 = vmatprep.subr.mxu0 0.0
        %438 = vmatpush1.msra.mxu0 0.0
        %439 = vmatprep.subr.mxu0 0.0
        %440 = vmatpush1.msra.mxu0 0.0
        %441 = vmatprep.subr.mxu0 0.0
        %442 = vmatpush1.msra.mxu0 0.0
        %443 = vmatprep.subr.mxu0 0.0
        %444 = vmatpush1.msra.mxu0 0.0
        %445 = vmatprep.subr.mxu0 0.0
        %446 = vmatpush1.msra.mxu0 0.0
        %447 = vmatprep.subr.mxu0 0.0
        %448 = vmatpush1.msra.mxu0 0.0
        %449 = vmatprep.subr.mxu0 0.0
        %450 = vmatpush1.msra.mxu0 0.0
        %451 = vmatprep.mubr.f32.mxu0 0.0
        %452 = vmatmul.mubr.f32.gmra.mrb[0].mxu0 %v385
        %v453 = vpop.f32.mrb[0].mxu0
        %v454 = vadd.f32 0.0, %v453
        %v455 = vpop.f32.mrb[0].mxu0
        %456 = vdwg.mxu0
        %vm457 = vcmask 130048
        %v459 = vsel %vm457, %v304, 0
        %v462 = vsel %vm457, %v305, 0
        %464 = vmatprep.subr.mxu0 0.0
        %465 = vmatpush1.msra.mxu0 %v308
        %466 = vmatprep.subr.mxu0 0.0
        %467 = vmatpush1.msra.mxu0 %v309
        %468 = vmatprep.subr.mxu0 0.0
        %469 = vmatpush1.msra.mxu0 0.0
        %470 = vmatprep.subr.mxu0 0.0
        %471 = vmatpush1.msra.mxu0 0.0
        %472 = vmatprep.subr.mxu0 0.0
        %473 = vmatpush1.msra.mxu0 0.0
        %474 = vmatprep.subr.mxu0 0.0
        %475 = vmatpush1.msra.mxu0 0.0
        %476 = vmatprep.subr.mxu0 0.0
        %477 = vmatpush1.msra.mxu0 0.0
        %478 = vmatprep.subr.mxu0 0.0
        %479 = vmatpush1.msra.mxu0 0.0
        %480 = vmatprep.subr.mxu0 0.0
        %481 = vmatpush1.msra.mxu0 0.0
        %482 = vmatprep.subr.mxu0 0.0
        %483 = vmatpush1.msra.mxu0 0.0
        %484 = vmatprep.subr.mxu0 0.0
        %485 = vmatpush1.msra.mxu0 0.0
        %486 = vmatprep.subr.mxu0 0.0
        %487 = vmatpush1.msra.mxu0 0.0
        %488 = vmatprep.subr.mxu0 0.0
        %489 = vmatpush1.msra.mxu0 0.0
        %490 = vmatprep.subr.mxu0 0.0
        %491 = vmatpush1.msra.mxu0 0.0
        %492 = vmatprep.subr.mxu0 0.0
        %493 = vmatpush1.msra.mxu0 0.0
        %494 = vmatprep.subr.mxu0 0.0
        %495 = vmatpush1.msra.mxu0 0.0
        %496 = vmatprep.subr.mxu0 0.0
        %497 = vmatpush1.msra.mxu0 0.0
        %498 = vmatprep.subr.mxu0 0.0
        %499 = vmatpush1.msra.mxu0 0.0
        %500 = vmatprep.subr.mxu0 0.0
        %501 = vmatpush1.msra.mxu0 0.0
        %502 = vmatprep.subr.mxu0 0.0
        %503 = vmatpush1.msra.mxu0 0.0
        %504 = vmatprep.subr.mxu0 0.0
        %505 = vmatpush1.msra.mxu0 0.0
        %506 = vmatprep.subr.mxu0 0.0
        %507 = vmatpush1.msra.mxu0 0.0
        %508 = vmatprep.subr.mxu0 0.0
        %509 = vmatpush1.msra.mxu0 0.0
        %510 = vmatprep.subr.mxu0 0.0
        %511 = vmatpush1.msra.mxu0 0.0
        %512 = vmatprep.subr.mxu0 0.0
        %513 = vmatpush1.msra.mxu0 0.0
        %514 = vmatprep.subr.mxu0 0.0
        %515 = vmatpush1.msra.mxu0 0.0
        %516 = vmatprep.subr.mxu0 0.0
        %517 = vmatpush1.msra.mxu0 0.0
        %518 = vmatprep.subr.mxu0 0.0
        %519 = vmatpush1.msra.mxu0 0.0
        %520 = vmatprep.subr.mxu0 0.0
        %521 = vmatpush1.msra.mxu0 0.0
        %522 = vmatprep.subr.mxu0 0.0
        %523 = vmatpush1.msra.mxu0 0.0
        %524 = vmatprep.subr.mxu0 0.0
        %525 = vmatpush1.msra.mxu0 0.0
        %526 = vmatprep.subr.mxu0 0.0
        %527 = vmatpush1.msra.mxu0 0.0
        %528 = vmatprep.mubr.f32.mxu0 0.0
        %529 = vmatmul.mubr.f32.gmra.mrb[0].mxu0 %v459
        %v530 = vpop.f32.mrb[0].mxu0
        %v531 = vadd.f32 0.0, %v530
        %v532 = vpop.f32.mrb[0].mxu0
        %533 = vmatprep.mubr.f32.mxu0 0.0
        %534 = vmatmul.mubr.f32.gmra.mrb[0].mxu0 %v462
        %v535 = vpop.f32.mrb[0].mxu0
        %v536 = vadd.f32 0.0, %v535
        %v537 = vpop.f32.mrb[0].mxu0
        %538 = vdwg.mxu0
        %v540 = vsel %vm457, %v381, 0
        %v543 = vsel %vm457, %v454, 0
        %545 = vmatprep.subr.mxu0 0.0
        %546 = vmatpush1.msra.mxu0 %v306
        %547 = vmatprep.subr.mxu0 0.0
        %548 = vmatpush1.msra.mxu0 %v307
        %549 = vmatprep.subr.mxu0 0.0
        %550 = vmatpush1.msra.mxu0 0.0
        %551 = vmatprep.subr.mxu0 0.0
        %552 = vmatpush1.msra.mxu0 0.0
        %553 = vmatprep.subr.mxu0 0.0
        %554 = vmatpush1.msra.mxu0 0.0
        %555 = vmatprep.subr.mxu0 0.0
        %556 = vmatpush1.msra.mxu0 0.0
        %557 = vmatprep.subr.mxu0 0.0
        %558 = vmatpush1.msra.mxu0 0.0
        %559 = vmatprep.subr.mxu0 0.0
        %560 = vmatpush1.msra.mxu0 0.0
        %561 = vmatprep.subr.mxu0 0.0
        %562 = vmatpush1.msra.mxu0 0.0
        %563 = vmatprep.subr.mxu0 0.0
        %564 = vmatpush1.msra.mxu0 0.0
        %565 = vmatprep.subr.mxu0 0.0
        %566 = vmatpush1.msra.mxu0 0.0
        %567 = vmatprep.subr.mxu0 0.0
        %568 = vmatpush1.msra.mxu0 0.0
        %569 = vmatprep.subr.mxu0 0.0
        %570 = vmatpush1.msra.mxu0 0.0
        %571 = vmatprep.subr.mxu0 0.0
        %572 = vmatpush1.msra.mxu0 0.0
        %573 = vmatprep.subr.mxu0 0.0
        %574 = vmatpush1.msra.mxu0 0.0
        %575 = vmatprep.subr.mxu0 0.0
        %576 = vmatpush1.msra.mxu0 0.0
        %577 = vmatprep.subr.mxu0 0.0
        %578 = vmatpush1.msra.mxu0 0.0
        %579 = vmatprep.subr.mxu0 0.0
        %580 = vmatpush1.msra.mxu0 0.0
        %581 = vmatprep.subr.mxu0 0.0
        %582 = vmatpush1.msra.mxu0 0.0
        %583 = vmatprep.subr.mxu0 0.0
        %584 = vmatpush1.msra.mxu0 0.0
        %585 = vmatprep.subr.mxu0 0.0
        %586 = vmatpush1.msra.mxu0 0.0
        %587 = vmatprep.subr.mxu0 0.0
        %588 = vmatpush1.msra.mxu0 0.0
        %589 = vmatprep.subr.mxu0 0.0
        %590 = vmatpush1.msra.mxu0 0.0
        %591 = vmatprep.subr.mxu0 0.0
        %592 = vmatpush1.msra.mxu0 0.0
        %593 = vmatprep.subr.mxu0 0.0
        %594 = vmatpush1.msra.mxu0 0.0
        %595 = vmatprep.subr.mxu0 0.0
        %596 = vmatpush1.msra.mxu0 0.0
        %597 = vmatprep.subr.mxu0 0.0
        %598 = vmatpush1.msra.mxu0 0.0
        %599 = vmatprep.subr.mxu0 0.0
        %600 = vmatpush1.msra.mxu0 0.0
        %601 = vmatprep.subr.mxu0 0.0
        %602 = vmatpush1.msra.mxu0 0.0
        %603 = vmatprep.subr.mxu0 0.0
        %604 = vmatpush1.msra.mxu0 0.0
        %605 = vmatprep.subr.mxu0 0.0
        %606 = vmatpush1.msra.mxu0 0.0
        %607 = vmatprep.subr.mxu0 0.0
        %608 = vmatpush1.msra.mxu0 0.0
        %609 = vmatprep.mubr.f32.mxu0 0.0
        %610 = vmatmul.mubr.f32.gmra.mrb[0].mxu0 %v540
        %v611 = vpop.f32.mrb[0].mxu0
        %v612 = vadd.f32 %v531, %v611
        %v613 = vpop.f32.mrb[0].mxu0
        %614 = vmatprep.mubr.f32.mxu0 0.0
        %615 = vmatmul.mubr.f32.gmra.mrb[0].mxu0 %v543
        %v616 = vpop.f32.mrb[0].mxu0
        %v617 = vadd.f32 %v536, %v616
        %v618 = vpop.f32.mrb[0].mxu0
        %619 = vdwg.mxu0
        %vm620 = vcmask 261120
        %v621 = vsel %vm620, %v612, 0.0
        %622 = vadd.xlane.f32.xlu0 %v621
        %v623 = vpop.xlane.xlu0 %622
        %v624 = vsel %vm620, %v617, 0.0
        %625 = vadd.xlane.f32.xlu0 %v624
        %v626 = vpop.xlane.xlu0 %625
        %v627 = vrcp.pop 32.0
        %v628 = vmul.f32 %v623, %v627
        %v629 = vmul.f32 %v626, %v627
        %v630 = vsub.f32 %v612, %v628
        %v631 = vsub.f32 %v617, %v629
        %v632 = vmul.f32 %v630, %v630
        %v633 = vmul.f32 %v631, %v631
        %v634 = vsel %vm620, %v632, 0.0
        %635 = vadd.xlane.f32.xlu0 %v634
        %v636 = vpop.xlane.xlu0 %635
        %v637 = vsel %vm620, %v633, 0.0
        %638 = vadd.xlane.f32.xlu0 %v637
        %v639 = vpop.xlane.xlu0 %638
        %v640 = vmul.f32 %v636, %v627
        %v641 = vmul.f32 %v639, %v627
        %v642 = vadd.f32 %v640, 1e-05
        %v643 = vadd.f32 %v641, 1e-05
        %v644 = vrsqrt.pop %v642
        %v645 = vrsqrt.pop %v643
        %v646 = vmul.f32 %v630, %v644
        %v647 = vmul.f32 %v631, %v645
        %v648 = vld [vmem:[%s3] sm:$0x1]
        %v650 = vlaneseq
        %v651 = vshrl.u32 %v650, 7
        %v652 = vsub.s32 0, %v651
        %v653 = vrot.slane %v648, %v652
        %v655 = vmul.f32 %v646, %v653
        %v656 = vmul.f32 %v647, %v653
        %v657 = vld [vmem:[%s4] sm:$0x1]
        %v659 = vlaneseq
        %v660 = vshrl.u32 %v659, 7
        %v661 = vsub.s32 0, %v660
        %v662 = vrot.slane %v657, %v661
        %v664 = vadd.f32 %v655, %v662
        %v665 = vadd.f32 %v656, %v662
        %v666 = vmax.f32 %v664, 0.0
        %v667 = vmax.f32 %v665, 0.0
        %668 = vst.msk [vmem:[%s298] sm:$0xff] %vm620, %v666
        %669 = vst.msk [vmem:[%s298 + $0x8] sm:$0xff] %vm620, %v667
        %s670 = sand.u32 %s148, 1
        %s671 = scalar_lea.sflag [#allocation4], %s670
        %s672 = sand.u32 %s148, 1
        %s673 = smul.addr %s672, 16
        %s674 = scalar_lea.vmem [#allocation8], %s673
        // Predicated region
        $region53: #{tpu_custom_call.1} parent=39 // pred_check
          %p675 = pneg %p158
        $region54: #{tpu_custom_call.1} parent=39 // pred_check_branch
          %677 = sbr.rel (%p675) target = $region56
        $region55: #{tpu_custom_call.1} parent=39 // pred_region
          %s678 = smul.u32 2, %s25
          %s680 = ssub.s32 256, 256
          %681 = vsyncadd %s671, %s680
          %s682 = smul.addr %s678, 128
          %s683 = scalar_lea.hbm %s5, %s682
          %s684 = sshll.u32 %s674, 4
          %s685 = int_to_ptr.vmem [resolvable:$true] %s684
          %690 = dma.vmem_to_hbm [thread:$0]  %s685, 256, %s683, %s671, 128, 128, 8
        $region56: #{tpu_custom_call.1} parent=39 // pred_fallthru
          _
      $region40: #{tpu_custom_call.1} parent=5 // pred_fallthru
        _
      %p691 = scmp.le.s32.totalorder 2, %s20
      // Predicated region
      $region57: #{tpu_custom_call.1} parent=5 // pred_check
        %p692 = pneg %p691
      $region58: #{tpu_custom_call.1} parent=5 // pred_check_branch
        %694 = sbr.rel (%p692) target = $region60
      $region59: #{tpu_custom_call.1} parent=5 // pred_region
        %s695 = ssub.s32 %s20, 2
        // Predicated region
        $region61: #{tpu_custom_call.1} parent=59 // pred_check
          %p696 = pneg %p164
        $region62: #{tpu_custom_call.1} parent=59 // pred_check_branch
          %698 = sbr.rel (%p696) target = $region64
        $region63: #{tpu_custom_call.1} parent=59 // pred_region
          %s699 = sand.u32 %s149, 1
          %s700 = scalar_lea.sflag [#allocation4], %s699
          %s701 = sand.u32 %s149, 1
          %s702 = smul.addr %s701, 16
          %s703 = scalar_lea.vmem [#allocation8], %s702
          %704 = dma.done %s700, 256
        $region64: #{tpu_custom_call.1} parent=59 // pred_fallthru
          _
      $region60: #{tpu_custom_call.1} parent=5 // pred_fallthru
        _
    $region6: #{tpu_custom_call.1} parent=1 // loop_footer
      %s24 = sadd.s32 1, %s20
    $region7: #{tpu_custom_call.1} parent=1 // loop_footer_branch
      %19 = sbr.rel target = $region3
    $region8: #{tpu_custom_call.1} parent=1 // loop_exit
      _
    %705 = vsyncpa [#allocation3], 1
    %s706 = scalar_lea.sflag [#allocation3], 1
    %707 = vsyncpa %s706, 1
    %708 = vsyncpa [#allocation6], 1
    %s709 = scalar_lea.sflag [#allocation6], 1
    %710 = vsyncpa %s709, 1
    %711 = vsyncpa [#allocation4], 1
    %s712 = scalar_lea.sflag [#allocation4], 1
    %713 = vsyncpa %s712, 1

</llo_original>
